<compile_context>
chip_gen: v6e
topology: v6e:2x2x1
jax: 0.10.0
libtpu: 0.0.40
codegen_flags: <defaults>
</compile_context>

<pallas_src>
import jax
import jax.numpy as jnp
from jax.experimental import pallas as pl
from jax.experimental.pallas import tpu as pltpu


def _ru(x, m):
    return (x + m - 1) // m * m


def _vmem_budgets():
    """Generation-gated VMEM budgets (v5e/v6e: 128 MiB; v7x: 64 MiB per TensorCore)."""
    cap = 64 * 1024 * 1024
    try:
        info = pltpu.get_tpu_info()
        cap = int(getattr(info, "vmem_capacity_bytes", cap) or cap)
    except Exception:
        pass
    tile_budget = max(8 << 20, int(cap * 0.45))          # double-buffered x+w+out tiles
    vmem_limit = max(32 << 20, min(int(cap * 0.75), cap - (8 << 20)))
    return tile_budget, int(vmem_limit)


# ------------------------------------------------------------------------------------------
# Tile selection
# ------------------------------------------------------------------------------------------
def _choose_vpu_tiles(b, cin, cout, m128, tile_budget):
    # (a) lane-chunk LC: keep the two (B, Cout, LC) f32 accumulators ~vreg-resident (<=64 KiB)
    #     so the Cin MAC loop never spills them.
    acc_budget_elems = (64 * 1024) // 4
    lc = (acc_budget_elems // max(2 * b * cout, 1)) // 128 * 128
    lc = max(128, min(lc, m128))
    n128 = m128 // 128
    d = lc // 128
    while n128 % d:
        d -= 1
    lc = d * 128

    # (b) DMA tile TM: multiple of LC dividing M128 exactly, double-buffered blocks fit budget.
    bytes_per_lane = 2 * 4 * (cin * 2 * _ru(b, 8)          # x block   (Cin, 2, B, TM)
                              + cin * 2 * _ru(cout, 8)     # w block   (Cin, 2, Cout, TM)
                              + 2 * b * _ru(cout, 8))      # out block (2, B, Cout, TM)
    nchunks = m128 // lc
    k = max(1, min(tile_budget // (bytes_per_lane * lc), nchunks))
    if nchunks >= 2:     # keep >= 2 mode tiles per corner so the pipeline has work to overlap
        k = min(k, nchunks // 2)
    k = max(1, k)
    while nchunks % k:
        k -= 1
    return k * lc, lc


def _choose_mxu_tiles(b, cin, cout, m128, tile_budget):
    per_mode = 2 * 4 * (_ru(b, 8) * _ru(2 * cin, 128)            # x   (TM, B, 2Cin)
                        + _ru(2 * cin, 8) * _ru(2 * cout, 128)   # w   (TM, 2Cin, 2Cout)
                        + _ru(b, 8) * _ru(2 * cout, 128))        # out (TM, B, 2Cout)
    cap = max(8, tile_budget // per_mode)
    cap = min(cap, 512, m128)
    if m128 >= 256:
        cap = min(cap, m128 // 2)          # keep >= 2 mode tiles per corner
    n8 = m128 // 8
    d = max(1, min(cap // 8, n8))
    while n8 % d:
        d -= 1
    tmm = d * 8
    return tmm, min(8, tmm)


# ------------------------------------------------------------------------------------------
# Kernels
# ------------------------------------------------------------------------------------------
def _make_vpu_kernel(cin, cout, b, tm, lc):
    """VPU MAC path (small channel counts). Blocks:
       x_ref (Cin, 2, B, TM), w_ref (Cin, 2, Cout, TM), o_ref (2, B, Cout, TM)."""
    nchunks = tm // lc
    unroll_cin = cin <= 8

    def kernel(x_ref, w_ref, o_ref):
        def chunk_body(cidx, carry):
            off = pl.multiple_of(cidx * lc, lc)

            def mac(i, acc):
                acc_r, acc_i = acc
                xr = x_ref[i, 0, :, pl.ds(off, lc)][:, None, :]   # (B, 1, LC)
                xi = x_ref[i, 1, :, pl.ds(off, lc)][:, None, :]
                wr = w_ref[i, 0, :, pl.ds(off, lc)][None, :, :]   # (1, Cout, LC)
                wi = w_ref[i, 1, :, pl.ds(off, lc)][None, :, :]
                acc_r = acc_r + xr * wr - xi * wi
                acc_i = acc_i + xr * wi + xi * wr
                return acc_r, acc_i

            acc0 = (jnp.zeros((b, cout, lc), jnp.float32),
                    jnp.zeros((b, cout, lc), jnp.float32))
            acc_r, acc_i = jax.lax.fori_loop(0, cin, mac, acc0, unroll=unroll_cin)
            o_ref[0, :, :, pl.ds(off, lc)] = acc_r
            o_ref[1, :, :, pl.ds(off, lc)] = acc_i
            return carry

        jax.lax.fori_loop(0, nchunks, chunk_body, 0, unroll=(nchunks <= 4))

    return kernel


def _make_mxu_kernel(tmm, sub):
    """MXU path (wide channels). 2x2 real-block complex matmul per mode, batched over `sub`
       modes at a time. Blocks: x (TM, B, 2Cin), w (TM, 2Cin, 2Cout), o (TM, B, 2Cout)."""
    nsub = tmm // sub

    def kernel(x_ref, w_ref, o_ref):
        def body(s, carry):
            off = pl.multiple_of(s * sub, sub)
            xs = x_ref[pl.ds(off, sub)]
            ws = w_ref[pl.ds(off, sub)]
            o_ref[pl.ds(off, sub)] = jnp.einsum(
                "mbk,mko->mbo", xs, ws, preferred_element_type=jnp.float32)
            return carry

        jax.lax.fori_loop(0, nsub, body, 0, unroll=(nsub <= 2))

    return kernel


# ------------------------------------------------------------------------------------------
# Pallas-call wrappers
# ------------------------------------------------------------------------------------------
def _corner_mul_vpu(xr, xi, w_packed, b, cin, cout, m, m128):
    tile_budget, vmem_limit = _vmem_budgets()
    tm, lc = _choose_vpu_tiles(b, cin, cout, m128, tile_budget)
    nt = m128 // tm

    x_ri = jnp.stack([xr, xi], axis=1)                       # (4, 2, B, Cin, M)
    x_ri = jnp.transpose(x_ri, (0, 3, 1, 2, 4))              # (4, Cin, 2, B, M)
    x_ri = jnp.pad(x_ri, ((0, 0),) * 4 + ((0, m128 - m),))

    flops = 8 * 4 * b * cin * cout * m128
    bytes_accessed = 4 * (x_ri.size + w_packed.size + 4 * 2 * b * cout * m128)

    out = pl.pallas_call(
        _make_vpu_kernel(cin, cout, b, tm, lc),
        out_shape=jax.ShapeDtypeStruct((4, 2, b, cout, m128), jnp.float32),
        grid=(4, nt),
        in_specs=[
            pl.BlockSpec((None, cin, 2, b, tm), lambda c, t: (c, 0, 0, 0, t)),
            pl.BlockSpec((None, cin, 2, cout, tm), lambda c, t: (c, 0, 0, 0, t)),
        ],
        out_specs=pl.BlockSpec((None, 2, b, cout, tm), lambda c, t: (c, 0, 0, 0, t)),
        compiler_params=pltpu.CompilerParams(
            dimension_semantics=("parallel", "parallel"),
            vmem_limit_bytes=vmem_limit,
        ),
        cost_estimate=pl.CostEstimate(flops=int(flops), transcendentals=0,
                                      bytes_accessed=int(bytes_accessed)),
    )(x_ri, w_packed)

    return jax.lax.complex(out[:, 0, :, :, :m], out[:, 1, :, :, :m])   # (4, B, Cout, M)


def _corner_mul_mxu(xr, xi, w_packed, b, cin, cout, m, m128):
    tile_budget, vmem_limit = _vmem_budgets()
    tmm, sub = _choose_mxu_tiles(b, cin, cout, m128, tile_budget)
    nt = m128 // tmm

    xrm = jnp.moveaxis(xr, -1, 1)                            # (4, M, B, Cin)
    xim = jnp.moveaxis(xi, -1, 1)
    x_blk = jnp.concatenate([xrm, xim], axis=-1)             # (4, M, B, 2Cin)
    x_blk = jnp.pad(x_blk, ((0, 0), (0, m128 - m), (0, 0), (0, 0)))

    flops = 2 * 4 * b * (2 * cin) * (2 * cout) * m128
    bytes_accessed = 4 * (x_blk.size + w_packed.size + 4 * b * 2 * cout * m128)

    out = pl.pallas_call(
        _make_mxu_kernel(tmm, sub),
        out_shape=jax.ShapeDtypeStruct((4, m128, b, 2 * cout), jnp.float32),
        grid=(4, nt),
        in_specs=[
            pl.BlockSpec((None, tmm, b, 2 * cin), lambda c, t: (c, t, 0, 0)),
            pl.BlockSpec((None, tmm, 2 * cin, 2 * cout), lambda c, t: (c, t, 0, 0)),
        ],
        out_specs=pl.BlockSpec((None, tmm, b, 2 * cout), lambda c, t: (c, t, 0, 0)),
        compiler_params=pltpu.CompilerParams(
            dimension_semantics=("parallel", "parallel"),
            vmem_limit_bytes=vmem_limit,
        ),
        cost_estimate=pl.CostEstimate(flops=int(flops), transcendentals=0,
                                      bytes_accessed=int(bytes_accessed)),
    )(x_blk, w_packed)

    out = out[:, :m]                                         # (4, M, B, 2Cout)
    out_c = jax.lax.complex(out[..., :cout], out[..., cout:])
    return jnp.moveaxis(out_c, 1, -1)                        # (4, B, Cout, M)


# ------------------------------------------------------------------------------------------
# Module forward (factory packs weights once, outside the per-forward jit path)
# ------------------------------------------------------------------------------------------
def make_decom_spectral_conv3d(w1, w2, w3, w4, modes1, modes2, modes3, use_mxu=None):
    cin, cout = int(w1.shape[0]), int(w1.shape[1])
    m1, m2, m3 = int(modes1), int(modes2), int(modes3)
    m = m1 * m2 * m3
    m128 = pl.cdiv(m, 128) * 128
    if use_mxu is None:
        use_mxu = cin >= 32 and cout >= 32      # MXU per-mode matmul pays off for wide channels

    w = jnp.stack([w1, w2, w3, w4], axis=0).astype(jnp.complex64)   # (4, Cin, Cout, m1, m2, m3)
    wr = jnp.real(w).astype(jnp.float32).reshape(4, cin, cout, m)
    wi = jnp.imag(w).astype(jnp.float32).reshape(4, cin, cout, m)

    if use_mxu:
        wrm = jnp.moveaxis(wr, -1, 1)                                # (4, M, Cin, Cout)
        wim = jnp.moveaxis(wi, -1, 1)
        w_blk = jnp.concatenate(
            [jnp.concatenate([wrm, wim], axis=-1),
             jnp.concatenate([-wim, wrm], axis=-1)], axis=-2)        # (4, M, 2Cin, 2Cout)
        w_packed = jnp.pad(w_blk, ((0, 0), (0, m128 - m), (0, 0), (0, 0)))
    else:
        w_ri = jnp.stack([wr, wi], axis=2)                           # (4, Cin, 2, Cout, M)
        w_packed = jnp.pad(w_ri, ((0, 0),) * 4 + ((0, m128 - m),))

    def forward(x):
        b = x.shape[0]
        d1, d2, d3 = x.shape[-3], x.shape[-2], x.shape[-1]
        x_ft = jnp.fft.rfftn(x, axes=(-3, -2, -1)).astype(jnp.complex64)
        corners = jnp.stack([
            x_ft[:, :, :m1, :m2, :m3],
            x_ft[:, :, -m1:, :m2, :m3],
            x_ft[:, :, :m1, -m2:, :m3],
            x_ft[:, :, -m1:, -m2:, :m3],
        ], axis=0)                                                    # (4, B, Cin, m1, m2, m3)
        xr = jnp.real(corners).astype(jnp.float32).reshape(4, b, cin, m)
        xi = jnp.imag(corners).astype(jnp.float32).reshape(4, b, cin, m)

        if use_mxu:
            out_c = _corner_mul_mxu(xr, xi, w_packed, b, cin, cout, m, m128)
        else:
            out_c = _corner_mul_vpu(xr, xi, w_packed, b, cin, cout, m, m128)
        out_c = out_c.reshape(4, b, cout, m1, m2, m3)

        out_ft = jnp.zeros((b, cout, d1, d2, d3 // 2 + 1), dtype=jnp.complex64)
        out_ft = out_ft.at[:, :, :m1, :m2, :m3].set(out_c[0])
        out_ft = out_ft.at[:, :, -m1:, :m2, :m3].set(out_c[1])
        out_ft = out_ft.at[:, :, :m1, -m2:, :m3].set(out_c[2])
        out_ft = out_ft.at[:, :, -m1:, -m2:, :m3].set(out_c[3])
        return jnp.fft.irfftn(out_ft, s=(d1, d2, d3), axes=(-3, -2, -1))

    return forward


def _reference_forward(x, w1, w2, w3, w4, m1, m2, m3):
    """Pure-JAX reference mirroring the PyTorch module."""
    cout = w1.shape[1]
    b = x.shape[0]
    d1, d2, d3 = x.shape[-3], x.shape[-2], x.shape[-1]
    x_ft = jnp.fft.rfftn(x, axes=(-3, -2, -1)).astype(jnp.complex64)

    def cmul(inp, w):
        return jnp.einsum("bixyz,ioxyz->boxyz", inp, w,
                          precision=jax.lax.Precision.HIGHEST)

    out_ft = jnp.zeros((b, cout, d1, d2, d3 // 2 + 1), dtype=jnp.complex64)
    out_ft = out_ft.at[:, :, :m1, :m2, :m3].set(cmul(x_ft[:, :, :m1, :m2, :m3], w1))
    out_ft = out_ft.at[:, :, -m1:, :m2, :m3].set(cmul(x_ft[:, :, -m1:, :m2, :m3], w2))
    out_ft = out_ft.at[:, :, :m1, -m2:, :m3].set(cmul(x_ft[:, :, :m1, -m2:, :m3], w3))
    out_ft = out_ft.at[:, :, -m1:, -m2:, :m3].set(cmul(x_ft[:, :, -m1:, -m2:, :m3], w4))
    return jnp.fft.irfftn(out_ft, s=(d1, d2, d3), axes=(-3, -2, -1))


if __name__ == "__main__":
    master = jax.random.PRNGKey(0)
    keys = jax.random.split(master, 20)

    def mk_w(kr, ki, cin, cout, m1, m2, m3):
        scale = 1.0 / (cin * cout)
        wr = scale * jax.random.uniform(kr, (cin, cout, m1, m2, m3), dtype=jnp.float32)
        wi = scale * jax.random.uniform(ki, (cin, cout, m1, m2, m3), dtype=jnp.float32)
        return (wr + 1j * wi).astype(jnp.complex64)

    # ---- Config 1: small channels (VPU MAC path) ----
    B, Cin, Cout, D, MO = 2, 4, 4, 16, 4
    x = jax.random.normal(keys[0], (B, Cin, D, D, D), dtype=jnp.float32)
    w1 = mk_w(keys[1], keys[2], Cin, Cout, MO, MO, MO)
    w2 = mk_w(keys[3], keys[4], Cin, Cout, MO, MO, MO)
    w3 = mk_w(keys[5], keys[6], Cin, Cout, MO, MO, MO)
    w4 = mk_w(keys[7], keys[8], Cin, Cout, MO, MO, MO)

    fwd = jax.jit(make_decom_spectral_conv3d(w1, w2, w3, w4, MO, MO, MO))
    out = jax.block_until_ready(fwd(x))
    ref = jax.block_until_ready(_reference_forward(x, w1, w2, w3, w4, MO, MO, MO))
    assert out.shape == (B, Cout, D, D, D), out.shape
    assert jnp.allclose(out, ref, rtol=1e-3, atol=1e-5), float(jnp.max(jnp.abs(out - ref)))

    # ---- Config 2: wide channels (MXU 2x2-real-block batched matmul path) ----
    B2, C2, D2, MO2 = 2, 32, 8, 2
    x2 = jax.random.normal(keys[9], (B2, C2, D2, D2, D2), dtype=jnp.float32)
    v1 = mk_w(keys[10], keys[11], C2, C2, MO2, MO2, MO2)
    v2 = mk_w(keys[12], keys[13], C2, C2, MO2, MO2, MO2)
    v3 = mk_w(keys[14], keys[15], C2, C2, MO2, MO2, MO2)
    v4 = mk_w(keys[16], keys[17], C2, C2, MO2, MO2, MO2)

    fwd2 = jax.jit(make_decom_spectral_conv3d(v1, v2, v3, v4, MO2, MO2, MO2, use_mxu=True))
    out2 = jax.block_until_ready(fwd2(x2))
    ref2 = jax.block_until_ready(_reference_forward(x2, v1, v2, v3, v4, MO2, MO2, MO2))
    assert out2.shape == (B2, C2, D2, D2, D2), out2.shape
    assert jnp.allclose(out2, ref2, rtol=2e-3, atol=2e-5), float(jnp.max(jnp.abs(out2 - ref2)))

    print("KERNEL_OK")
</pallas_src>

<mosaic_0001>
module attributes {stable_mosaic.version = 11 : i64} {
  func.func @kernel(%arg0: i32, %arg1: i32, %arg2: memref<1x4x2x2x128xf32, #tpu.memory_space<vmem>>, %arg3: memref<1x4x2x4x128xf32, #tpu.memory_space<vmem>>, %arg4: memref<1x2x2x4x128xf32, #tpu.memory_space<vmem>>) attributes {dimension_semantics = [#tpu.dimension_semantics<parallel>, #tpu.dimension_semantics<parallel>], iteration_bounds = array<i64: 4, 1>, scalar_prefetch = 0 : i64, scratch_operands = 0 : i64, tpu.core_type = #tpu.core_type<tc>, window_params = [{transform_indices = @transform_0, window_bounds = array<i64: 1, 4, 2, 2, 128>}, {transform_indices = @transform_1, window_bounds = array<i64: 1, 4, 2, 4, 128>}, {transform_indices = @transform_2, window_bounds = array<i64: 1, 2, 2, 4, 128>}]} {
    %c0_i32 = arith.constant 0 : i32
    %c128_i32 = arith.constant 128 : i32
    %0 = arith.muli %c0_i32, %c128_i32 : i32
    %1 = tpu.assume_multiple %0, 128 : i32
    %cst = arith.constant 0.000000e+00 : f32
    %2 = vector.broadcast %cst : f32 to vector<2x4x128xf32>
    %cst_0 = arith.constant 0.000000e+00 : f32
    %3 = vector.broadcast %cst_0 : f32 to vector<2x4x128xf32>
    %c0_i32_1 = arith.constant 0 : i32
    %c0 = arith.constant 0 : index
    %4 = arith.index_cast %c0_i32_1 : i32 to index
    %c0_2 = arith.constant 0 : index
    %c0_3 = arith.constant 0 : index
    %5 = arith.index_cast %1 : i32 to index
    %6 = vector.load %arg2[%c0, %4, %c0_2, %c0_3, %5] : memref<1x4x2x2x128xf32, #tpu.memory_space<vmem>>, vector<1x1x1x2x128xf32>
    %7 = vector.shape_cast %6 : vector<1x1x1x2x128xf32> to vector<2x128xf32>
    %8 = vector.shape_cast %7 : vector<2x128xf32> to vector<2x1x128xf32>
    %c0_4 = arith.constant 0 : index
    %9 = arith.index_cast %c0_i32_1 : i32 to index
    %c1 = arith.constant 1 : index
    %c0_5 = arith.constant 0 : index
    %10 = arith.index_cast %1 : i32 to index
    %11 = vector.load %arg2[%c0_4, %9, %c1, %c0_5, %10] : memref<1x4x2x2x128xf32, #tpu.memory_space<vmem>>, vector<1x1x1x2x128xf32>
    %12 = vector.shape_cast %11 : vector<1x1x1x2x128xf32> to vector<2x128xf32>
    %13 = vector.shape_cast %12 : vector<2x128xf32> to vector<2x1x128xf32>
    %c0_6 = arith.constant 0 : index
    %14 = arith.index_cast %c0_i32_1 : i32 to index
    %c0_7 = arith.constant 0 : index
    %c0_8 = arith.constant 0 : index
    %15 = arith.index_cast %1 : i32 to index
    %16 = vector.load %arg3[%c0_6, %14, %c0_7, %c0_8, %15] : memref<1x4x2x4x128xf32, #tpu.memory_space<vmem>>, vector<1x1x1x4x128xf32>
    %17 = vector.shape_cast %16 : vector<1x1x1x4x128xf32> to vector<4x128xf32>
    %18 = vector.shape_cast %17 : vector<4x128xf32> to vector<1x4x128xf32>
    %c0_9 = arith.constant 0 : index
    %19 = arith.index_cast %c0_i32_1 : i32 to index
    %c1_10 = arith.constant 1 : index
    %c0_11 = arith.constant 0 : index
    %20 = arith.index_cast %1 : i32 to index
    %21 = vector.load %arg3[%c0_9, %19, %c1_10, %c0_11, %20] : memref<1x4x2x4x128xf32, #tpu.memory_space<vmem>>, vector<1x1x1x4x128xf32>
    %22 = vector.shape_cast %21 : vector<1x1x1x4x128xf32> to vector<4x128xf32>
    %23 = vector.shape_cast %22 : vector<4x128xf32> to vector<1x4x128xf32>
    %24 = vector.broadcast %8 : vector<2x1x128xf32> to vector<2x4x128xf32>
    %25 = vector.broadcast %18 : vector<1x4x128xf32> to vector<2x4x128xf32>
    %26 = arith.mulf %24, %25 : vector<2x4x128xf32>
    %27 = arith.addf %2, %26 : vector<2x4x128xf32>
    %28 = vector.broadcast %13 : vector<2x1x128xf32> to vector<2x4x128xf32>
    %29 = vector.broadcast %23 : vector<1x4x128xf32> to vector<2x4x128xf32>
    %30 = arith.mulf %28, %29 : vector<2x4x128xf32>
    %31 = arith.subf %27, %30 : vector<2x4x128xf32>
    %32 = vector.broadcast %8 : vector<2x1x128xf32> to vector<2x4x128xf32>
    %33 = vector.broadcast %23 : vector<1x4x128xf32> to vector<2x4x128xf32>
    %34 = arith.mulf %32, %33 : vector<2x4x128xf32>
    %35 = arith.addf %3, %34 : vector<2x4x128xf32>
    %36 = vector.broadcast %13 : vector<2x1x128xf32> to vector<2x4x128xf32>
    %37 = vector.broadcast %18 : vector<1x4x128xf32> to vector<2x4x128xf32>
    %38 = arith.mulf %36, %37 : vector<2x4x128xf32>
    %39 = arith.addf %35, %38 : vector<2x4x128xf32>
    %c1_i32 = arith.constant 1 : i32
    %c0_12 = arith.constant 0 : index
    %40 = arith.index_cast %c1_i32 : i32 to index
    %c0_13 = arith.constant 0 : index
    %c0_14 = arith.constant 0 : index
    %41 = arith.index_cast %1 : i32 to index
    %42 = vector.load %arg2[%c0_12, %40, %c0_13, %c0_14, %41] : memref<1x4x2x2x128xf32, #tpu.memory_space<vmem>>, vector<1x1x1x2x128xf32>
    %43 = vector.shape_cast %42 : vector<1x1x1x2x128xf32> to vector<2x128xf32>
    %44 = vector.shape_cast %43 : vector<2x128xf32> to vector<2x1x128xf32>
    %c0_15 = arith.constant 0 : index
    %45 = arith.index_cast %c1_i32 : i32 to index
    %c1_16 = arith.constant 1 : index
    %c0_17 = arith.constant 0 : index
    %46 = arith.index_cast %1 : i32 to index
    %47 = vector.load %arg2[%c0_15, %45, %c1_16, %c0_17, %46] : memref<1x4x2x2x128xf32, #tpu.memory_space<vmem>>, vector<1x1x1x2x128xf32>
    %48 = vector.shape_cast %47 : vector<1x1x1x2x128xf32> to vector<2x128xf32>
    %49 = vector.shape_cast %48 : vector<2x128xf32> to vector<2x1x128xf32>
    %c0_18 = arith.constant 0 : index
    %50 = arith.index_cast %c1_i32 : i32 to index
    %c0_19 = arith.constant 0 : index
    %c0_20 = arith.constant 0 : index
    %51 = arith.index_cast %1 : i32 to index
    %52 = vector.load %arg3[%c0_18, %50, %c0_19, %c0_20, %51] : memref<1x4x2x4x128xf32, #tpu.memory_space<vmem>>, vector<1x1x1x4x128xf32>
    %53 = vector.shape_cast %52 : vector<1x1x1x4x128xf32> to vector<4x128xf32>
    %54 = vector.shape_cast %53 : vector<4x128xf32> to vector<1x4x128xf32>
    %c0_21 = arith.constant 0 : index
    %55 = arith.index_cast %c1_i32 : i32 to index
    %c1_22 = arith.constant 1 : index
    %c0_23 = arith.constant 0 : index
    %56 = arith.index_cast %1 : i32 to index
    %57 = vector.load %arg3[%c0_21, %55, %c1_22, %c0_23, %56] : memref<1x4x2x4x128xf32, #tpu.memory_space<vmem>>, vector<1x1x1x4x128xf32>
    %58 = vector.shape_cast %57 : vector<1x1x1x4x128xf32> to vector<4x128xf32>
    %59 = vector.shape_cast %58 : vector<4x128xf32> to vector<1x4x128xf32>
    %60 = vector.broadcast %44 : vector<2x1x128xf32> to vector<2x4x128xf32>
    %61 = vector.broadcast %54 : vector<1x4x128xf32> to vector<2x4x128xf32>
    %62 = arith.mulf %60, %61 : vector<2x4x128xf32>
    %63 = arith.addf %31, %62 : vector<2x4x128xf32>
    %64 = vector.broadcast %49 : vector<2x1x128xf32> to vector<2x4x128xf32>
    %65 = vector.broadcast %59 : vector<1x4x128xf32> to vector<2x4x128xf32>
    %66 = arith.mulf %64, %65 : vector<2x4x128xf32>
    %67 = arith.subf %63, %66 : vector<2x4x128xf32>
    %68 = vector.broadcast %44 : vector<2x1x128xf32> to vector<2x4x128xf32>
    %69 = vector.broadcast %59 : vector<1x4x128xf32> to vector<2x4x128xf32>
    %70 = arith.mulf %68, %69 : vector<2x4x128xf32>
    %71 = arith.addf %39, %70 : vector<2x4x128xf32>
    %72 = vector.broadcast %49 : vector<2x1x128xf32> to vector<2x4x128xf32>
    %73 = vector.broadcast %54 : vector<1x4x128xf32> to vector<2x4x128xf32>
    %74 = arith.mulf %72, %73 : vector<2x4x128xf32>
    %75 = arith.addf %71, %74 : vector<2x4x128xf32>
    %c2_i32 = arith.constant 2 : i32
    %c0_24 = arith.constant 0 : index
    %76 = arith.index_cast %c2_i32 : i32 to index
    %c0_25 = arith.constant 0 : index
    %c0_26 = arith.constant 0 : index
    %77 = arith.index_cast %1 : i32 to index
    %78 = vector.load %arg2[%c0_24, %76, %c0_25, %c0_26, %77] : memref<1x4x2x2x128xf32, #tpu.memory_space<vmem>>, vector<1x1x1x2x128xf32>
    %79 = vector.shape_cast %78 : vector<1x1x1x2x128xf32> to vector<2x128xf32>
    %80 = vector.shape_cast %79 : vector<2x128xf32> to vector<2x1x128xf32>
    %c0_27 = arith.constant 0 : index
    %81 = arith.index_cast %c2_i32 : i32 to index
    %c1_28 = arith.constant 1 : index
    %c0_29 = arith.constant 0 : index
    %82 = arith.index_cast %1 : i32 to index
    %83 = vector.load %arg2[%c0_27, %81, %c1_28, %c0_29, %82] : memref<1x4x2x2x128xf32, #tpu.memory_space<vmem>>, vector<1x1x1x2x128xf32>
    %84 = vector.shape_cast %83 : vector<1x1x1x2x128xf32> to vector<2x128xf32>
    %85 = vector.shape_cast %84 : vector<2x128xf32> to vector<2x1x128xf32>
    %c0_30 = arith.constant 0 : index
    %86 = arith.index_cast %c2_i32 : i32 to index
    %c0_31 = arith.constant 0 : index
    %c0_32 = arith.constant 0 : index
    %87 = arith.index_cast %1 : i32 to index
    %88 = vector.load %arg3[%c0_30, %86, %c0_31, %c0_32, %87] : memref<1x4x2x4x128xf32, #tpu.memory_space<vmem>>, vector<1x1x1x4x128xf32>
    %89 = vector.shape_cast %88 : vector<1x1x1x4x128xf32> to vector<4x128xf32>
    %90 = vector.shape_cast %89 : vector<4x128xf32> to vector<1x4x128xf32>
    %c0_33 = arith.constant 0 : index
    %91 = arith.index_cast %c2_i32 : i32 to index
    %c1_34 = arith.constant 1 : index
    %c0_35 = arith.constant 0 : index
    %92 = arith.index_cast %1 : i32 to index
    %93 = vector.load %arg3[%c0_33, %91, %c1_34, %c0_35, %92] : memref<1x4x2x4x128xf32, #tpu.memory_space<vmem>>, vector<1x1x1x4x128xf32>
    %94 = vector.shape_cast %93 : vector<1x1x1x4x128xf32> to vector<4x128xf32>
    %95 = vector.shape_cast %94 : vector<4x128xf32> to vector<1x4x128xf32>
    %96 = vector.broadcast %80 : vector<2x1x128xf32> to vector<2x4x128xf32>
    %97 = vector.broadcast %90 : vector<1x4x128xf32> to vector<2x4x128xf32>
    %98 = arith.mulf %96, %97 : vector<2x4x128xf32>
    %99 = arith.addf %67, %98 : vector<2x4x128xf32>
    %100 = vector.broadcast %85 : vector<2x1x128xf32> to vector<2x4x128xf32>
    %101 = vector.broadcast %95 : vector<1x4x128xf32> to vector<2x4x128xf32>
    %102 = arith.mulf %100, %101 : vector<2x4x128xf32>
    %103 = arith.subf %99, %102 : vector<2x4x128xf32>
    %104 = vector.broadcast %80 : vector<2x1x128xf32> to vector<2x4x128xf32>
    %105 = vector.broadcast %95 : vector<1x4x128xf32> to vector<2x4x128xf32>
    %106 = arith.mulf %104, %105 : vector<2x4x128xf32>
    %107 = arith.addf %75, %106 : vector<2x4x128xf32>
    %108 = vector.broadcast %85 : vector<2x1x128xf32> to vector<2x4x128xf32>
    %109 = vector.broadcast %90 : vector<1x4x128xf32> to vector<2x4x128xf32>
    %110 = arith.mulf %108, %109 : vector<2x4x128xf32>
    %111 = arith.addf %107, %110 : vector<2x4x128xf32>
    %c3_i32 = arith.constant 3 : i32
    %c0_36 = arith.constant 0 : index
    %112 = arith.index_cast %c3_i32 : i32 to index
    %c0_37 = arith.constant 0 : index
    %c0_38 = arith.constant 0 : index
    %113 = arith.index_cast %1 : i32 to index
    %114 = vector.load %arg2[%c0_36, %112, %c0_37, %c0_38, %113] : memref<1x4x2x2x128xf32, #tpu.memory_space<vmem>>, vector<1x1x1x2x128xf32>
    %115 = vector.shape_cast %114 : vector<1x1x1x2x128xf32> to vector<2x128xf32>
    %116 = vector.shape_cast %115 : vector<2x128xf32> to vector<2x1x128xf32>
    %c0_39 = arith.constant 0 : index
    %117 = arith.index_cast %c3_i32 : i32 to index
    %c1_40 = arith.constant 1 : index
    %c0_41 = arith.constant 0 : index
    %118 = arith.index_cast %1 : i32 to index
    %119 = vector.load %arg2[%c0_39, %117, %c1_40, %c0_41, %118] : memref<1x4x2x2x128xf32, #tpu.memory_space<vmem>>, vector<1x1x1x2x128xf32>
    %120 = vector.shape_cast %119 : vector<1x1x1x2x128xf32> to vector<2x128xf32>
    %121 = vector.shape_cast %120 : vector<2x128xf32> to vector<2x1x128xf32>
    %c0_42 = arith.constant 0 : index
    %122 = arith.index_cast %c3_i32 : i32 to index
    %c0_43 = arith.constant 0 : index
    %c0_44 = arith.constant 0 : index
    %123 = arith.index_cast %1 : i32 to index
    %124 = vector.load %arg3[%c0_42, %122, %c0_43, %c0_44, %123] : memref<1x4x2x4x128xf32, #tpu.memory_space<vmem>>, vector<1x1x1x4x128xf32>
    %125 = vector.shape_cast %124 : vector<1x1x1x4x128xf32> to vector<4x128xf32>
    %126 = vector.shape_cast %125 : vector<4x128xf32> to vector<1x4x128xf32>
    %c0_45 = arith.constant 0 : index
    %127 = arith.index_cast %c3_i32 : i32 to index
    %c1_46 = arith.constant 1 : index
    %c0_47 = arith.constant 0 : index
    %128 = arith.index_cast %1 : i32 to index
    %129 = vector.load %arg3[%c0_45, %127, %c1_46, %c0_47, %128] : memref<1x4x2x4x128xf32, #tpu.memory_space<vmem>>, vector<1x1x1x4x128xf32>
    %130 = vector.shape_cast %129 : vector<1x1x1x4x128xf32> to vector<4x128xf32>
    %131 = vector.shape_cast %130 : vector<4x128xf32> to vector<1x4x128xf32>
    %132 = vector.broadcast %116 : vector<2x1x128xf32> to vector<2x4x128xf32>
    %133 = vector.broadcast %126 : vector<1x4x128xf32> to vector<2x4x128xf32>
    %134 = arith.mulf %132, %133 : vector<2x4x128xf32>
    %135 = arith.addf %103, %134 : vector<2x4x128xf32>
    %136 = vector.broadcast %121 : vector<2x1x128xf32> to vector<2x4x128xf32>
    %137 = vector.broadcast %131 : vector<1x4x128xf32> to vector<2x4x128xf32>
    %138 = arith.mulf %136, %137 : vector<2x4x128xf32>
    %139 = arith.subf %135, %138 : vector<2x4x128xf32>
    %140 = vector.broadcast %116 : vector<2x1x128xf32> to vector<2x4x128xf32>
    %141 = vector.broadcast %131 : vector<1x4x128xf32> to vector<2x4x128xf32>
    %142 = arith.mulf %140, %141 : vector<2x4x128xf32>
    %143 = arith.addf %111, %142 : vector<2x4x128xf32>
    %144 = vector.broadcast %121 : vector<2x1x128xf32> to vector<2x4x128xf32>
    %145 = vector.broadcast %126 : vector<1x4x128xf32> to vector<2x4x128xf32>
    %146 = arith.mulf %144, %145 : vector<2x4x128xf32>
    %147 = arith.addf %143, %146 : vector<2x4x128xf32>
    %c4_i32 = arith.constant 4 : i32
    %c0_48 = arith.constant 0 : index
    %c0_49 = arith.constant 0 : index
    %c0_50 = arith.constant 0 : index
    %c0_51 = arith.constant 0 : index
    %148 = arith.index_cast %1 : i32 to index
    %149 = vector.load %arg4[%c0_48, %c0_49, %c0_50, %c0_51, %148] : memref<1x2x2x4x128xf32, #tpu.memory_space<vmem>>, vector<1x1x2x4x128xf32>
    %150 = vector.shape_cast %149 : vector<1x1x2x4x128xf32> to vector<2x4x128xf32>
    %151 = vector.shape_cast %139 : vector<2x4x128xf32> to vector<1x1x2x4x128xf32>
    tpu.vector_store %arg4[%c0_48, %c0_49, %c0_50, %c0_51, %148], %151 {strides = array<i32>} : memref<1x2x2x4x128xf32, #tpu.memory_space<vmem>>, vector<1x1x2x4x128xf32>,
    %c0_52 = arith.constant 0 : index
    %c1_53 = arith.constant 1 : index
    %c0_54 = arith.constant 0 : index
    %c0_55 = arith.constant 0 : index
    %152 = arith.index_cast %1 : i32 to index
    %153 = vector.load %arg4[%c0_52, %c1_53, %c0_54, %c0_55, %152] : memref<1x2x2x4x128xf32, #tpu.memory_space<vmem>>, vector<1x1x2x4x128xf32>
    %154 = vector.shape_cast %153 : vector<1x1x2x4x128xf32> to vector<2x4x128xf32>
    %155 = vector.shape_cast %147 : vector<2x4x128xf32> to vector<1x1x2x4x128xf32>
    tpu.vector_store %arg4[%c0_52, %c1_53, %c0_54, %c0_55, %152], %155 {strides = array<i32>} : memref<1x2x2x4x128xf32, #tpu.memory_space<vmem>>, vector<1x1x2x4x128xf32>,
    %c1_i32_56 = arith.constant 1 : i32
    return
  }
  func.func @transform_0(%arg0: i32, %arg1: i32) -> (i32, i32, i32, i32, i32) {
    %c0_i32 = arith.constant 0 : i32
    %c0_i32_0 = arith.constant 0 : i32
    %c0_i32_1 = arith.constant 0 : i32
    %c0_i32_2 = arith.constant 0 : i32
    return %arg0, %c0_i32, %c0_i32_0, %c0_i32_1, %arg1 : i32, i32, i32, i32, i32
  }
  func.func @transform_1(%arg0: i32, %arg1: i32) -> (i32, i32, i32, i32, i32) {
    %c0_i32 = arith.constant 0 : i32
    %c0_i32_0 = arith.constant 0 : i32
    %c0_i32_1 = arith.constant 0 : i32
    %c0_i32_2 = arith.constant 0 : i32
    return %arg0, %c0_i32, %c0_i32_0, %c0_i32_1, %arg1 : i32, i32, i32, i32, i32
  }
  func.func @transform_2(%arg0: i32, %arg1: i32) -> (i32, i32, i32, i32, i32) {
    %c0_i32 = arith.constant 0 : i32
    %c0_i32_0 = arith.constant 0 : i32
    %c0_i32_1 = arith.constant 0 : i32
    %c0_i32_2 = arith.constant 0 : i32
    return %arg0, %c0_i32, %c0_i32_0, %c0_i32_1, %arg1 : i32, i32, i32, i32, i32
  }
}

</mosaic_0001>

<llo_original>
// kernel: forward.1
$region0: #{forward.1}
  #allocation0 [shape = 'u32[]', space=smem, size = 0x4, offset = 0x4, fixed_abs, tag = 'smem constant byte address 0x4 - core index']
  #allocation1 [shape = 'u32[144,128]{1,0:T(1,128)}', space=vmem, size = 0x12000, scoped, tag = 'internal scratch']
  %s0 = inlined_call_operand.vmem [shape: f32[4,4,2,2,128], index: 0, kind: input, shape index: {}]
  %s1 = inlined_call_operand.vmem [shape: f32[4,4,2,4,128], index: 1, kind: input, shape index: {}]
  %s2 = inlined_call_operand.vmem [shape: f32[4,2,2,4,128], index: 2, kind: output, shape index: {}]
  %s3 = sld [smem:[#allocation0]]
  $region41: #{forward.1} parent=0
    _
  %s5 = ssub.s32 1, %s3
  %s6 = scalar_select 0, %s5, %s3
  loop: start=0, step=1, limit=6
  $region2: #{forward.1} parent=0 // loop_pre_header
    _
  $region3: #{forward.1} parent=0 // loop_header
    %s8 = sphi 0, %s12
    %p9 = scmp.ge.s32.totalorder %s8, 6
    %s15 = sphi 0, %s27
    %s16 = sphi 0, %s23
    %s17 = sphi 0, %s15
    %s18 = sphi 0, %s16
    %s19 = sphi 0, %s17
    %s20 = sphi 0, %s18
    %s32 = sphi 0, %s34
    %s35 = sphi 0, %s32
    %s36 = sphi 0, %s35
    %s52 = sphi 0, %s36
    %s60 = sphi 0, %s62
    %s63 = sphi 0, %s60
    %s64 = sphi 0, %s63
    %s80 = sphi 0, %s64
    %s88 = sphi 0, %s90
    %s91 = sphi 0, %s88
    %s92 = sphi 0, %s91
    %s108 = sphi 0, %s92
  $region4: #{forward.1} parent=0 // loop_header_branch
    %11 = sbr.rel (%p9) target = $region8
  $region5: #{forward.1} parent=0 // loop_body
    %s13 = ssub.s32 %s8, 1
    %s14 = ssub.s32 %s8, 2
    %s21 = sadd.s32 1, %s16
    %p22 = scmp.ge.s32.totalorder %s21, 1
    %s23 = scalar_select %p22, 0, %s21
    %s24 = sadd.s32 1, %s15
    %s25 = scalar_select %p22, %s24, %s15
    %p26 = scmp.ge.s32.totalorder %s25, 4
    %s27 = scalar_select %p26, 0, %s25
    %s28 = ssub.s32 %s15, %s27
    %s29 = ssub.s32 %s16, %s23
    %s30 = sor.u32 %s28, %s29
    %p31 = scmp.eq.s32.totalorder %s30, 0
    %s33 = sadd.s32 %s32, 1
    %s34 = scalar_select %p31, %s32, %s33
    %p37 = pneg %p31
    %p38 = scmp.eq.s32.totalorder %s8, 3
    %p39 = por %p37, %p38
    %p40 = scmp.ne.s32.totalorder %s32, %s35
    %p41 = scmp.eq.s32.totalorder %s8, 0
    %p42 = por %p40, %p41
    %p43 = scmp.ne.s32.totalorder %s32, %s35
    %p44 = scmp.eq.s32.totalorder %s13, 3
    %p45 = por %p43, %p44
    %p46 = scmp.ne.s32.totalorder %s35, %s36
    %p47 = scmp.eq.s32.totalorder %s13, 0
    %p48 = por %p46, %p47
    %p49 = scmp.ne.s32.totalorder %s35, %s36
    %p50 = scmp.eq.s32.totalorder %s14, 3
    %p51 = por %p49, %p50
    %p53 = scmp.ne.s32.totalorder %s36, %s52
    %p54 = scmp.eq.s32.totalorder %s14, 0
    %p55 = por %p53, %p54
    %s56 = ssub.s32 %s15, %s27
    %s57 = ssub.s32 %s16, %s23
    %s58 = sor.u32 %s56, %s57
    %p59 = scmp.eq.s32.totalorder %s58, 0
    %s61 = sadd.s32 %s60, 1
    %s62 = scalar_select %p59, %s60, %s61
    %p65 = pneg %p59
    %p66 = scmp.eq.s32.totalorder %s8, 3
    %p67 = por %p65, %p66
    %p68 = scmp.ne.s32.totalorder %s60, %s63
    %p69 = scmp.eq.s32.totalorder %s8, 0
    %p70 = por %p68, %p69
    %p71 = scmp.ne.s32.totalorder %s60, %s63
    %p72 = scmp.eq.s32.totalorder %s13, 3
    %p73 = por %p71, %p72
    %p74 = scmp.ne.s32.totalorder %s63, %s64
    %p75 = scmp.eq.s32.totalorder %s13, 0
    %p76 = por %p74, %p75
    %p77 = scmp.ne.s32.totalorder %s63, %s64
    %p78 = scmp.eq.s32.totalorder %s14, 3
    %p79 = por %p77, %p78
    %p81 = scmp.ne.s32.totalorder %s64, %s80
    %p82 = scmp.eq.s32.totalorder %s14, 0
    %p83 = por %p81, %p82
    %s84 = ssub.s32 %s15, %s27
    %s85 = ssub.s32 %s16, %s23
    %s86 = sor.u32 %s84, %s85
    %p87 = scmp.eq.s32.totalorder %s86, 0
    %s89 = sadd.s32 %s88, 1
    %s90 = scalar_select %p87, %s88, %s89
    %p93 = pneg %p87
    %p94 = scmp.eq.s32.totalorder %s8, 3
    %p95 = por %p93, %p94
    %p96 = scmp.ne.s32.totalorder %s88, %s91
    %p97 = scmp.eq.s32.totalorder %s8, 0
    %p98 = por %p96, %p97
    %p99 = scmp.ne.s32.totalorder %s88, %s91
    %p100 = scmp.eq.s32.totalorder %s13, 3
    %p101 = por %p99, %p100
    %p102 = scmp.ne.s32.totalorder %s91, %s92
    %p103 = scmp.eq.s32.totalorder %s13, 0
    %p104 = por %p102, %p103
    %p105 = scmp.ne.s32.totalorder %s91, %s92
    %p106 = scmp.eq.s32.totalorder %s14, 3
    %p107 = por %p105, %p106
    %p109 = scmp.ne.s32.totalorder %s92, %s108
    %p110 = scmp.eq.s32.totalorder %s14, 0
    %p111 = por %p109, %p110
    %p112 = scmp.le.s32.totalorder 1, %s8
    %p113 = scmp.lt.s32.totalorder %s8, 5
    %p114 = pnand %p112, %p113
    %p115 = pneg %p114
    // Predicated region
    $region9: #{forward.1} parent=5 // pred_check
      _
    $region10: #{forward.1} parent=5 // pred_check_branch
      %117 = sbr.rel (%p114) target = $region12
    $region11: #{forward.1} parent=5 // pred_region
      %s118 = ssub.s32 %s8, 1
    $region12: #{forward.1} parent=5 // pred_fallthru
      _
    %p119 = scmp.lt.s32.totalorder %s8, 4
    // Predicated region
    $region13: #{forward.1} parent=5 // pred_check
      %p120 = pneg %p119
    $region14: #{forward.1} parent=5 // pred_check_branch
      %122 = sbr.rel (%p120) target = $region16
    $region15: #{forward.1} parent=5 // pred_region
      // Predicated region
      $region17: #{forward.1} parent=15 // pred_check
        %p123 = pneg %p42
      $region18: #{forward.1} parent=15 // pred_check_branch
        %125 = sbr.rel (%p123) target = $region20
      $region19: #{forward.1} parent=15 // pred_region
        %p126 = scmp.lt.s32.totalorder %s15, 3
        %s127 = scalar_select %p126, %s15, 3
        %p128 = scmp.lt.s32.totalorder %s16, 0
        %s129 = scalar_select %p128, %s16, 0
        %s130 = smul.addr %s127, 8
        %s131 = sadd.s32 %s129, %s130
        %s132 = smul.addr %s131, 2
        %s133 = scalar_lea.vmem %s0, %s132
      $region20: #{forward.1} parent=15 // pred_fallthru
        _
      // Predicated region
      $region21: #{forward.1} parent=15 // pred_check
        %p134 = pneg %p70
      $region22: #{forward.1} parent=15 // pred_check_branch
        %136 = sbr.rel (%p134) target = $region24
      $region23: #{forward.1} parent=15 // pred_region
        %p137 = scmp.lt.s32.totalorder %s15, 3
        %s138 = scalar_select %p137, %s15, 3
        %p139 = scmp.lt.s32.totalorder %s16, 0
        %s140 = scalar_select %p139, %s16, 0
        %s141 = smul.addr %s138, 8
        %s142 = sadd.s32 %s140, %s141
        %s143 = smul.addr %s142, 4
        %s144 = scalar_lea.vmem %s1, %s143
      $region24: #{forward.1} parent=15 // pred_fallthru
        _
    $region16: #{forward.1} parent=5 // pred_fallthru
      _
    %p145 = scmp.le.s32.totalorder 1, %s8
    %p146 = scmp.lt.s32.totalorder %s8, 5
    %p147 = pnand %p145, %p146
    %p148 = pneg %p147
    // Predicated region
    $region25: #{forward.1} parent=5 // pred_check
      _
    $region26: #{forward.1} parent=5 // pred_check_branch
      %150 = sbr.rel (%p147) target = $region28
    $region27: #{forward.1} parent=5 // pred_region
      %s151 = ssub.s32 %s8, 1
      %p152 = scmp.lt.s32.totalorder %s17, 3
      %s153 = scalar_select %p152, %s17, 3
      %p154 = scmp.lt.s32.totalorder %s18, 0
      %s155 = scalar_select %p154, %s18, 0
      %s156 = smul.addr %s153, 8
      %s157 = sadd.s32 %s155, %s156
      %s158 = smul.addr %s157, 2
      %s159 = scalar_lea.vmem %s0, %s158
      %p160 = pneg %p48
      %p161 = pneg %p45
      %p162 = scmp.lt.s32.totalorder %s17, 3
      %s163 = scalar_select %p162, %s17, 3
      %p164 = scmp.lt.s32.totalorder %s18, 0
      %s165 = scalar_select %p164, %s18, 0
      %s166 = smul.addr %s163, 8
      %s167 = sadd.s32 %s165, %s166
      %s168 = smul.addr %s167, 4
      %s169 = scalar_lea.vmem %s1, %s168
      %p170 = pneg %p76
      %p171 = pneg %p73
      %p172 = pneg %p104
      %p173 = pneg %p101
      %p174 = scmp.lt.s32.totalorder %s17, 3
      %s175 = scalar_select %p174, %s17, 3
      %p176 = scmp.lt.s32.totalorder %s18, 0
      %s177 = scalar_select %p176, %s18, 0
      %s178 = smul.addr %s175, 4
      %s179 = sadd.s32 %s177, %s178
      %s180 = smul.addr %s179, 4
      %s181 = scalar_lea.vmem %s2, %s180
      %p182 = scmp.lt.s32.totalorder %s17, 3
      %s183 = scalar_select %p182, %s17, 3
      %p184 = scmp.lt.s32.totalorder %s18, 0
      %s185 = scalar_select %p184, %s18, 0
      %s186 = smul.addr %s183, 8
      %s187 = sadd.s32 %s185, %s186
      %s188 = smul.addr %s187, 2
      %s189 = scalar_lea.vmem %s0, %s188
      %p190 = scmp.lt.s32.totalorder %s17, 3
      %s191 = scalar_select %p190, %s17, 3
      %p192 = scmp.lt.s32.totalorder %s18, 0
      %s193 = scalar_select %p192, %s18, 0
      %s194 = smul.addr %s191, 8
      %s195 = sadd.s32 %s193, %s194
      %s196 = smul.addr %s195, 4
      %s197 = scalar_lea.vmem %s1, %s196
      %p198 = scmp.lt.s32.totalorder %s17, 3
      %s199 = scalar_select %p198, %s17, 3
      %p200 = scmp.lt.s32.totalorder %s18, 0
      %s201 = scalar_select %p200, %s18, 0
      %s202 = smul.addr %s199, 4
      %s203 = sadd.s32 %s201, %s202
      %s204 = smul.addr %s203, 4
      %s205 = scalar_lea.vmem %s2, %s204
      %v206 = vld [vmem:[%s189] sm:$0x3]
      %v209 = vunpack.c.l.s4 1966171168
      %v210 = vunpack.c.0.s8 %v209
      %v211 = vlaneseq
      %v212 = vshrl.u32 %v211, 7
      %v213 = vsub.s32 %v210, %v212
      %v214 = vrot.slane %v206, %v213
      %v215 = vcombine.high %v214, %v214
      %v217 = vunpack.c.l.s4 1966171168
      %v218 = vunpack.c.0.s8 %v217
      %v219 = vlaneseq
      %v220 = vshrl.u32 %v219, 7
      %v221 = vsub.s32 %v218, %v220
      %v222 = vrot.slane %v214, %v221
      %v224 = vunpack.c.l.s4 1966171168
      %v225 = vunpack.c.0.s8 %v224
      %v226 = vlaneseq
      %v227 = vshrl.u32 %v226, 7
      %v228 = vsub.s32 %v225, %v227
      %v229 = vrot.slane %v215, %v228
      %s230 = sadd.s32 0, 2
      %s231 = scalar_lea.vmem %s189, %s230
      %v232 = vld [vmem:[%s231] sm:$0x3]
      %v235 = vunpack.c.l.s4 1966171168
      %v236 = vunpack.c.0.s8 %v235
      %v237 = vlaneseq
      %v238 = vshrl.u32 %v237, 7
      %v239 = vsub.s32 %v236, %v238
      %v240 = vrot.slane %v232, %v239
      %v241 = vcombine.high %v240, %v240
      %v243 = vunpack.c.l.s4 1966171168
      %v244 = vunpack.c.0.s8 %v243
      %v245 = vlaneseq
      %v246 = vshrl.u32 %v245, 7
      %v247 = vsub.s32 %v244, %v246
      %v248 = vrot.slane %v240, %v247
      %v250 = vunpack.c.l.s4 1966171168
      %v251 = vunpack.c.0.s8 %v250
      %v252 = vlaneseq
      %v253 = vshrl.u32 %v252, 7
      %v254 = vsub.s32 %v251, %v253
      %v255 = vrot.slane %v241, %v254
      %v256 = vld [vmem:[%s197] sm:$0xf]
      %s257 = sadd.s32 0, 4
      %s258 = scalar_lea.vmem %s197, %s257
      %v259 = vld [vmem:[%s258] sm:$0xf]
      %v260 = vlaneseq
      %v261 = vshrl.u32 %v260, 7
      %v262 = vsub.s32 0, %v261
      %v263 = vrot.slane %v222, %v262
      %v264 = vlaneseq
      %v265 = vshrl.u32 %v264, 7
      %v266 = vsub.s32 0, %v265
      %v267 = vrot.slane %v229, %v266
      %v270 = vmul.f32 %v263, %v256
      %v271 = vmul.f32 %v267, %v256
      %v272 = vadd.f32 %v270, 0.0
      %v273 = vadd.f32 %v271, 0.0
      %v274 = vlaneseq
      %v275 = vshrl.u32 %v274, 7
      %v276 = vsub.s32 0, %v275
      %v277 = vrot.slane %v248, %v276
      %v278 = vlaneseq
      %v279 = vshrl.u32 %v278, 7
      %v280 = vsub.s32 0, %v279
      %v281 = vrot.slane %v255, %v280
      %v284 = vmul.f32 %v277, %v259
      %v285 = vmul.f32 %v281, %v259
      %v286 = vsub.f32 %v272, %v284
      %v287 = vsub.f32 %v273, %v285
      %v288 = vmul.f32 %v263, %v259
      %v289 = vmul.f32 %v267, %v259
      %v290 = vadd.f32 %v288, 0.0
      %v291 = vadd.f32 %v289, 0.0
      %v292 = vmul.f32 %v277, %v256
      %v293 = vmul.f32 %v281, %v256
      %v294 = vadd.f32 %v290, %v292
      %v295 = vadd.f32 %v291, %v293
      %s296 = scalar_lea.vmem %s189, %s257
      %v297 = vld [vmem:[%s296] sm:$0x3]
      %v300 = vunpack.c.l.s4 1966171168
      %v301 = vunpack.c.0.s8 %v300
      %v302 = vlaneseq
      %v303 = vshrl.u32 %v302, 7
      %v304 = vsub.s32 %v301, %v303
      %v305 = vrot.slane %v297, %v304
      %v306 = vcombine.high %v305, %v305
      %v308 = vunpack.c.l.s4 1966171168
      %v309 = vunpack.c.0.s8 %v308
      %v310 = vlaneseq
      %v311 = vshrl.u32 %v310, 7
      %v312 = vsub.s32 %v309, %v311
      %v313 = vrot.slane %v305, %v312
      %v315 = vunpack.c.l.s4 1966171168
      %v316 = vunpack.c.0.s8 %v315
      %v317 = vlaneseq
      %v318 = vshrl.u32 %v317, 7
      %v319 = vsub.s32 %v316, %v318
      %v320 = vrot.slane %v306, %v319
      %s321 = sadd.s32 %s230, 4
      %s322 = scalar_lea.vmem %s189, %s321
      %v323 = vld [vmem:[%s322] sm:$0x3]
      %v326 = vunpack.c.l.s4 1966171168
      %v327 = vunpack.c.0.s8 %v326
      %v328 = vlaneseq
      %v329 = vshrl.u32 %v328, 7
      %v330 = vsub.s32 %v327, %v329
      %v331 = vrot.slane %v323, %v330
      %v332 = vcombine.high %v331, %v331
      %v334 = vunpack.c.l.s4 1966171168
      %v335 = vunpack.c.0.s8 %v334
      %v336 = vlaneseq
      %v337 = vshrl.u32 %v336, 7
      %v338 = vsub.s32 %v335, %v337
      %v339 = vrot.slane %v331, %v338
      %v341 = vunpack.c.l.s4 1966171168
      %v342 = vunpack.c.0.s8 %v341
      %v343 = vlaneseq
      %v344 = vshrl.u32 %v343, 7
      %v345 = vsub.s32 %v342, %v344
      %v346 = vrot.slane %v332, %v345
      %s347 = sadd.s32 0, 8
      %s348 = scalar_lea.vmem %s197, %s347
      %v349 = vld [vmem:[%s348] sm:$0xf]
      %s350 = sadd.s32 %s257, 8
      %s351 = scalar_lea.vmem %s197, %s350
      %v352 = vld [vmem:[%s351] sm:$0xf]
      %v353 = vlaneseq
      %v354 = vshrl.u32 %v353, 7
      %v355 = vsub.s32 0, %v354
      %v356 = vrot.slane %v313, %v355
      %v357 = vlaneseq
      %v358 = vshrl.u32 %v357, 7
      %v359 = vsub.s32 0, %v358
      %v360 = vrot.slane %v320, %v359
      %v363 = vmul.f32 %v356, %v349
      %v364 = vmul.f32 %v360, %v349
      %v365 = vadd.f32 %v286, %v363
      %v366 = vadd.f32 %v287, %v364
      %v367 = vlaneseq
      %v368 = vshrl.u32 %v367, 7
      %v369 = vsub.s32 0, %v368
      %v370 = vrot.slane %v339, %v369
      %v371 = vlaneseq
      %v372 = vshrl.u32 %v371, 7
      %v373 = vsub.s32 0, %v372
      %v374 = vrot.slane %v346, %v373
      %v377 = vmul.f32 %v370, %v352
      %v378 = vmul.f32 %v374, %v352
      %v379 = vsub.f32 %v365, %v377
      %v380 = vsub.f32 %v366, %v378
      %v381 = vmul.f32 %v356, %v352
      %v382 = vmul.f32 %v360, %v352
      %v383 = vadd.f32 %v294, %v381
      %v384 = vadd.f32 %v295, %v382
      %v385 = vmul.f32 %v370, %v349
      %v386 = vmul.f32 %v374, %v349
      %v387 = vadd.f32 %v383, %v385
      %v388 = vadd.f32 %v384, %v386
      %s389 = scalar_lea.vmem %s189, %s347
      %v390 = vld [vmem:[%s389] sm:$0x3]
      %v393 = vunpack.c.l.s4 1966171168
      %v394 = vunpack.c.0.s8 %v393
      %v395 = vlaneseq
      %v396 = vshrl.u32 %v395, 7
      %v397 = vsub.s32 %v394, %v396
      %v398 = vrot.slane %v390, %v397
      %v399 = vcombine.high %v398, %v398
      %v401 = vunpack.c.l.s4 1966171168
      %v402 = vunpack.c.0.s8 %v401
      %v403 = vlaneseq
      %v404 = vshrl.u32 %v403, 7
      %v405 = vsub.s32 %v402, %v404
      %v406 = vrot.slane %v398, %v405
      %v408 = vunpack.c.l.s4 1966171168
      %v409 = vunpack.c.0.s8 %v408
      %v410 = vlaneseq
      %v411 = vshrl.u32 %v410, 7
      %v412 = vsub.s32 %v409, %v411
      %v413 = vrot.slane %v399, %v412
      %s414 = sadd.s32 %s230, 8
      %s415 = scalar_lea.vmem %s189, %s414
      %v416 = vld [vmem:[%s415] sm:$0x3]
      %v419 = vunpack.c.l.s4 1966171168
      %v420 = vunpack.c.0.s8 %v419
      %v421 = vlaneseq
      %v422 = vshrl.u32 %v421, 7
      %v423 = vsub.s32 %v420, %v422
      %v424 = vrot.slane %v416, %v423
      %v425 = vcombine.high %v424, %v424
      %v427 = vunpack.c.l.s4 1966171168
      %v428 = vunpack.c.0.s8 %v427
      %v429 = vlaneseq
      %v430 = vshrl.u32 %v429, 7
      %v431 = vsub.s32 %v428, %v430
      %v432 = vrot.slane %v424, %v431
      %v434 = vunpack.c.l.s4 1966171168
      %v435 = vunpack.c.0.s8 %v434
      %v436 = vlaneseq
      %v437 = vshrl.u32 %v436, 7
      %v438 = vsub.s32 %v435, %v437
      %v439 = vrot.slane %v425, %v438
      %s440 = sadd.s32 0, 16
      %s441 = scalar_lea.vmem %s197, %s440
      %v442 = vld [vmem:[%s441] sm:$0xf]
      %s443 = sadd.s32 %s257, 16
      %s444 = scalar_lea.vmem %s197, %s443
      %v445 = vld [vmem:[%s444] sm:$0xf]
      %v446 = vlaneseq
      %v447 = vshrl.u32 %v446, 7
      %v448 = vsub.s32 0, %v447
      %v449 = vrot.slane %v406, %v448
      %v450 = vlaneseq
      %v451 = vshrl.u32 %v450, 7
      %v452 = vsub.s32 0, %v451
      %v453 = vrot.slane %v413, %v452
      %v456 = vmul.f32 %v449, %v442
      %v457 = vmul.f32 %v453, %v442
      %v458 = vadd.f32 %v379, %v456
      %v459 = vadd.f32 %v380, %v457
      %v460 = vlaneseq
      %v461 = vshrl.u32 %v460, 7
      %v462 = vsub.s32 0, %v461
      %v463 = vrot.slane %v432, %v462
      %v464 = vlaneseq
      %v465 = vshrl.u32 %v464, 7
      %v466 = vsub.s32 0, %v465
      %v467 = vrot.slane %v439, %v466
      %v470 = vmul.f32 %v463, %v445
      %v471 = vmul.f32 %v467, %v445
      %v472 = vsub.f32 %v458, %v470
      %v473 = vsub.f32 %v459, %v471
      %v474 = vmul.f32 %v449, %v445
      %v475 = vmul.f32 %v453, %v445
      %v476 = vadd.f32 %v387, %v474
      %v477 = vadd.f32 %v388, %v475
      %v478 = vmul.f32 %v463, %v442
      %v479 = vmul.f32 %v467, %v442
      %v480 = vadd.f32 %v476, %v478
      %v481 = vadd.f32 %v477, %v479
      %s482 = sadd.s32 0, 12
      %s483 = scalar_lea.vmem %s189, %s482
      %v484 = vld [vmem:[%s483] sm:$0x3]
      %v487 = vunpack.c.l.s4 1966171168
      %v488 = vunpack.c.0.s8 %v487
      %v489 = vlaneseq
      %v490 = vshrl.u32 %v489, 7
      %v491 = vsub.s32 %v488, %v490
      %v492 = vrot.slane %v484, %v491
      %v493 = vcombine.high %v492, %v492
      %v495 = vunpack.c.l.s4 1966171168
      %v496 = vunpack.c.0.s8 %v495
      %v497 = vlaneseq
      %v498 = vshrl.u32 %v497, 7
      %v499 = vsub.s32 %v496, %v498
      %v500 = vrot.slane %v492, %v499
      %v502 = vunpack.c.l.s4 1966171168
      %v503 = vunpack.c.0.s8 %v502
      %v504 = vlaneseq
      %v505 = vshrl.u32 %v504, 7
      %v506 = vsub.s32 %v503, %v505
      %v507 = vrot.slane %v493, %v506
      %s508 = sadd.s32 %s230, 12
      %s509 = scalar_lea.vmem %s189, %s508
      %v510 = vld [vmem:[%s509] sm:$0x3]
      %v513 = vunpack.c.l.s4 1966171168
      %v514 = vunpack.c.0.s8 %v513
      %v515 = vlaneseq
      %v516 = vshrl.u32 %v515, 7
      %v517 = vsub.s32 %v514, %v516
      %v518 = vrot.slane %v510, %v517
      %v519 = vcombine.high %v518, %v518
      %v521 = vunpack.c.l.s4 1966171168
      %v522 = vunpack.c.0.s8 %v521
      %v523 = vlaneseq
      %v524 = vshrl.u32 %v523, 7
      %v525 = vsub.s32 %v522, %v524
      %v526 = vrot.slane %v518, %v525
      %v528 = vunpack.c.l.s4 1966171168
      %v529 = vunpack.c.0.s8 %v528
      %v530 = vlaneseq
      %v531 = vshrl.u32 %v530, 7
      %v532 = vsub.s32 %v529, %v531
      %v533 = vrot.slane %v519, %v532
      %s534 = sadd.s32 0, 24
      %s535 = scalar_lea.vmem %s197, %s534
      %v536 = vld [vmem:[%s535] sm:$0xf]
      %s537 = sadd.s32 %s257, 24
      %s538 = scalar_lea.vmem %s197, %s537
      %v539 = vld [vmem:[%s538] sm:$0xf]
      %v540 = vlaneseq
      %v541 = vshrl.u32 %v540, 7
      %v542 = vsub.s32 0, %v541
      %v543 = vrot.slane %v500, %v542
      %v544 = vlaneseq
      %v545 = vshrl.u32 %v544, 7
      %v546 = vsub.s32 0, %v545
      %v547 = vrot.slane %v507, %v546
      %v550 = vmul.f32 %v543, %v536
      %v551 = vmul.f32 %v547, %v536
      %v552 = vadd.f32 %v472, %v550
      %v553 = vadd.f32 %v473, %v551
      %v554 = vlaneseq
      %v555 = vshrl.u32 %v554, 7
      %v556 = vsub.s32 0, %v555
      %v557 = vrot.slane %v526, %v556
      %v558 = vlaneseq
      %v559 = vshrl.u32 %v558, 7
      %v560 = vsub.s32 0, %v559
      %v561 = vrot.slane %v533, %v560
      %v564 = vmul.f32 %v557, %v539
      %v565 = vmul.f32 %v561, %v539
      %v566 = vsub.f32 %v552, %v564
      %v567 = vsub.f32 %v553, %v565
      %v568 = vmul.f32 %v543, %v539
      %v569 = vmul.f32 %v547, %v539
      %v570 = vadd.f32 %v480, %v568
      %v571 = vadd.f32 %v481, %v569
      %v572 = vmul.f32 %v557, %v536
      %v573 = vmul.f32 %v561, %v536
      %v574 = vadd.f32 %v570, %v572
      %v575 = vadd.f32 %v571, %v573
      %576 = vst [vmem:[%s205] sm:$0xf] %v566
      %577 = vst [vmem:[%s205 + $0x4] sm:$0xf] %v567
      %s578 = scalar_lea.vmem %s205, %s347
      %579 = vst [vmem:[%s578] sm:$0xf] %v574
      %580 = vst [vmem:[%s578 + $0x4] sm:$0xf] %v575
      %p581 = scmp.lt.s32.totalorder %s17, 3
      %s582 = scalar_select %p581, %s17, 3
      %p583 = scmp.lt.s32.totalorder %s18, 0
      %s584 = scalar_select %p583, %s18, 0
      %s585 = smul.addr %s582, 4
      %s586 = sadd.s32 %s584, %s585
      %s587 = smul.addr %s586, 4
      %s588 = scalar_lea.vmem %s2, %s587
      // Predicated region
      $region29: #{forward.1} parent=27 // pred_check
        %p589 = pneg %p101
      $region30: #{forward.1} parent=27 // pred_check_branch
        %591 = sbr.rel (%p589) target = $region32
      $region31: #{forward.1} parent=27 // pred_region
        _
      $region32: #{forward.1} parent=27 // pred_fallthru
        _
    $region28: #{forward.1} parent=5 // pred_fallthru
      _
    %p592 = scmp.le.s32.totalorder 2, %s8
    // Predicated region
    $region33: #{forward.1} parent=5 // pred_check
      %p593 = pneg %p592
    $region34: #{forward.1} parent=5 // pred_check_branch
      %595 = sbr.rel (%p593) target = $region36
    $region35: #{forward.1} parent=5 // pred_region
      %s596 = ssub.s32 %s8, 2
      // Predicated region
      $region37: #{forward.1} parent=35 // pred_check
        %p597 = pneg %p107
      $region38: #{forward.1} parent=35 // pred_check_branch
        %599 = sbr.rel (%p597) target = $region40
      $region39: #{forward.1} parent=35 // pred_region
        %p600 = scmp.lt.s32.totalorder %s19, 3
        %s601 = scalar_select %p600, %s19, 3
        %p602 = scmp.lt.s32.totalorder %s20, 0
        %s603 = scalar_select %p602, %s20, 0
        %s604 = smul.addr %s601, 4
        %s605 = sadd.s32 %s603, %s604
        %s606 = smul.addr %s605, 4
        %s607 = scalar_lea.vmem %s2, %s606
      $region40: #{forward.1} parent=35 // pred_fallthru
        _
    $region36: #{forward.1} parent=5 // pred_fallthru
      _
  $region6: #{forward.1} parent=0 // loop_footer
    %s12 = sadd.s32 1, %s8
  $region7: #{forward.1} parent=0 // loop_footer_branch
    %7 = sbr.rel target = $region3
  $region8: #{forward.1} parent=0 // loop_exit
    _

// kernel: reverse.1
$region0: #{reverse.1}
  #allocation0 [shape = 's32[1]{0}', space=sflag, size = 0x4, scoped, tag = 'scoped memory for reverse.1']
  %s0 = inlined_call_operand.vmem [shape: f32[2,4,16,16,7], index: 0, kind: input, shape index: {}]
  %s1 = inlined_call_operand.vmem [shape: f32[2,4,16,16,7], index: 1, kind: output, shape index: {}]
  %s2 = scalar_lea.vmem %s0, 96
  %v3 = vld [vmem:[%s2] sm:$0xff]
  %4 = vst [vmem:[%s1] sm:$0xff] %v3
  %s5 = scalar_lea.vmem %s0, 544
  %v6 = vld [vmem:[%s5] sm:$0xff]
  %s7 = scalar_lea.vmem %s1, 448
  %8 = vst [vmem:[%s7] sm:$0xff] %v6
  %s9 = scalar_lea.vmem %s0, 208
  %v10 = vld [vmem:[%s9] sm:$0xff]
  %s11 = scalar_lea.vmem %s1, 112
  %12 = vst [vmem:[%s11] sm:$0xff] %v10
  %s13 = scalar_lea.vmem %s0, 656
  %v14 = vld [vmem:[%s13] sm:$0xff]
  %s15 = scalar_lea.vmem %s1, 560
  %16 = vst [vmem:[%s15] sm:$0xff] %v14
  %s17 = scalar_lea.vmem %s0, 320
  %v18 = vld [vmem:[%s17] sm:$0xff]
  %s19 = scalar_lea.vmem %s1, 224
  %20 = vst [vmem:[%s19] sm:$0xff] %v18
  %s21 = scalar_lea.vmem %s0, 768
  %v22 = vld [vmem:[%s21] sm:$0xff]
  %s23 = scalar_lea.vmem %s1, 672
  %24 = vst [vmem:[%s23] sm:$0xff] %v22
  %s25 = scalar_lea.vmem %s0, 432
  %v26 = vld [vmem:[%s25] sm:$0xff]
  %s27 = scalar_lea.vmem %s1, 336
  %28 = vst [vmem:[%s27] sm:$0xff] %v26
  %s29 = scalar_lea.vmem %s0, 880
  %v30 = vld [vmem:[%s29] sm:$0xff]
  %s31 = scalar_lea.vmem %s1, 784
  %32 = vst [vmem:[%s31] sm:$0xff] %v30
  %s33 = scalar_lea.vmem %s0, 80
  %v34 = vld [vmem:[%s33] sm:$0xff]
  %s35 = scalar_lea.vmem %s1, 16
  %36 = vst [vmem:[%s35] sm:$0xff] %v34
  %s37 = scalar_lea.vmem %s0, 528
  %v38 = vld [vmem:[%s37] sm:$0xff]
  %s39 = scalar_lea.vmem %s1, 464
  %40 = vst [vmem:[%s39] sm:$0xff] %v38
  %s41 = scalar_lea.vmem %s0, 192
  %v42 = vld [vmem:[%s41] sm:$0xff]
  %s43 = scalar_lea.vmem %s1, 128
  %44 = vst [vmem:[%s43] sm:$0xff] %v42
  %s45 = scalar_lea.vmem %s0, 640
  %v46 = vld [vmem:[%s45] sm:$0xff]
  %s47 = scalar_lea.vmem %s1, 576
  %48 = vst [vmem:[%s47] sm:$0xff] %v46
  %s49 = scalar_lea.vmem %s0, 304
  %v50 = vld [vmem:[%s49] sm:$0xff]
  %s51 = scalar_lea.vmem %s1, 240
  %52 = vst [vmem:[%s51] sm:$0xff] %v50
  %s53 = scalar_lea.vmem %s0, 752
  %v54 = vld [vmem:[%s53] sm:$0xff]
  %s55 = scalar_lea.vmem %s1, 688
  %56 = vst [vmem:[%s55] sm:$0xff] %v54
  %s57 = scalar_lea.vmem %s0, 416
  %v58 = vld [vmem:[%s57] sm:$0xff]
  %s59 = scalar_lea.vmem %s1, 352
  %60 = vst [vmem:[%s59] sm:$0xff] %v58
  %s61 = scalar_lea.vmem %s0, 864
  %v62 = vld [vmem:[%s61] sm:$0xff]
  %s63 = scalar_lea.vmem %s1, 800
  %64 = vst [vmem:[%s63] sm:$0xff] %v62
  %s65 = scalar_lea.vmem %s0, 64
  %v66 = vld [vmem:[%s65] sm:$0xff]
  %s67 = scalar_lea.vmem %s1, 32
  %68 = vst [vmem:[%s67] sm:$0xff] %v66
  %s69 = scalar_lea.vmem %s0, 512
  %v70 = vld [vmem:[%s69] sm:$0xff]
  %s71 = scalar_lea.vmem %s1, 480
  %72 = vst [vmem:[%s71] sm:$0xff] %v70
  %s73 = scalar_lea.vmem %s0, 176
  %v74 = vld [vmem:[%s73] sm:$0xff]
  %s75 = scalar_lea.vmem %s1, 144
  %76 = vst [vmem:[%s75] sm:$0xff] %v74
  %s77 = scalar_lea.vmem %s0, 624
  %v78 = vld [vmem:[%s77] sm:$0xff]
  %s79 = scalar_lea.vmem %s1, 592
  %80 = vst [vmem:[%s79] sm:$0xff] %v78
  %s81 = scalar_lea.vmem %s0, 288
  %v82 = vld [vmem:[%s81] sm:$0xff]
  %s83 = scalar_lea.vmem %s1, 256
  %84 = vst [vmem:[%s83] sm:$0xff] %v82
  %s85 = scalar_lea.vmem %s0, 736
  %v86 = vld [vmem:[%s85] sm:$0xff]
  %s87 = scalar_lea.vmem %s1, 704
  %88 = vst [vmem:[%s87] sm:$0xff] %v86
  %s89 = scalar_lea.vmem %s0, 400
  %v90 = vld [vmem:[%s89] sm:$0xff]
  %s91 = scalar_lea.vmem %s1, 368
  %92 = vst [vmem:[%s91] sm:$0xff] %v90
  %s93 = scalar_lea.vmem %s0, 848
  %v94 = vld [vmem:[%s93] sm:$0xff]
  %s95 = scalar_lea.vmem %s1, 816
  %96 = vst [vmem:[%s95] sm:$0xff] %v94
  %s97 = scalar_lea.vmem %s0, 48
  %v98 = vld [vmem:[%s97] sm:$0xff]
  %s99 = scalar_lea.vmem %s1, 48
  %100 = vst [vmem:[%s99] sm:$0xff] %v98
  %s101 = scalar_lea.vmem %s0, 496
  %v102 = vld [vmem:[%s101] sm:$0xff]
  %s103 = scalar_lea.vmem %s1, 496
  %104 = vst [vmem:[%s103] sm:$0xff] %v102
  %s105 = scalar_lea.vmem %s0, 160
  %v106 = vld [vmem:[%s105] sm:$0xff]
  %s107 = scalar_lea.vmem %s1, 160
  %108 = vst [vmem:[%s107] sm:$0xff] %v106
  %s109 = scalar_lea.vmem %s0, 608
  %v110 = vld [vmem:[%s109] sm:$0xff]
  %s111 = scalar_lea.vmem %s1, 608
  %112 = vst [vmem:[%s111] sm:$0xff] %v110
  %s113 = scalar_lea.vmem %s0, 272
  %v114 = vld [vmem:[%s113] sm:$0xff]
  %s115 = scalar_lea.vmem %s1, 272
  %116 = vst [vmem:[%s115] sm:$0xff] %v114
  %s117 = scalar_lea.vmem %s0, 720
  %v118 = vld [vmem:[%s117] sm:$0xff]
  %s119 = scalar_lea.vmem %s1, 720
  %120 = vst [vmem:[%s119] sm:$0xff] %v118
  %s121 = scalar_lea.vmem %s0, 384
  %v122 = vld [vmem:[%s121] sm:$0xff]
  %s123 = scalar_lea.vmem %s1, 384
  %124 = vst [vmem:[%s123] sm:$0xff] %v122
  %s125 = scalar_lea.vmem %s0, 832
  %v126 = vld [vmem:[%s125] sm:$0xff]
  %s127 = scalar_lea.vmem %s1, 832
  %128 = vst [vmem:[%s127] sm:$0xff] %v126
  %s129 = scalar_lea.vmem %s0, 32
  %v130 = vld [vmem:[%s129] sm:$0xff]
  %s131 = scalar_lea.vmem %s1, 64
  %132 = vst [vmem:[%s131] sm:$0xff] %v130
  %s133 = scalar_lea.vmem %s0, 480
  %v134 = vld [vmem:[%s133] sm:$0xff]
  %s135 = scalar_lea.vmem %s1, 512
  %136 = vst [vmem:[%s135] sm:$0xff] %v134
  %s137 = scalar_lea.vmem %s0, 144
  %v138 = vld [vmem:[%s137] sm:$0xff]
  %s139 = scalar_lea.vmem %s1, 176
  %140 = vst [vmem:[%s139] sm:$0xff] %v138
  %s141 = scalar_lea.vmem %s0, 592
  %v142 = vld [vmem:[%s141] sm:$0xff]
  %s143 = scalar_lea.vmem %s1, 624
  %144 = vst [vmem:[%s143] sm:$0xff] %v142
  %s145 = scalar_lea.vmem %s0, 256
  %v146 = vld [vmem:[%s145] sm:$0xff]
  %s147 = scalar_lea.vmem %s1, 288
  %148 = vst [vmem:[%s147] sm:$0xff] %v146
  %s149 = scalar_lea.vmem %s0, 704
  %v150 = vld [vmem:[%s149] sm:$0xff]
  %s151 = scalar_lea.vmem %s1, 736
  %152 = vst [vmem:[%s151] sm:$0xff] %v150
  %s153 = scalar_lea.vmem %s0, 368
  %v154 = vld [vmem:[%s153] sm:$0xff]
  %s155 = scalar_lea.vmem %s1, 400
  %156 = vst [vmem:[%s155] sm:$0xff] %v154
  %s157 = scalar_lea.vmem %s0, 816
  %v158 = vld [vmem:[%s157] sm:$0xff]
  %s159 = scalar_lea.vmem %s1, 848
  %160 = vst [vmem:[%s159] sm:$0xff] %v158
  %s161 = scalar_lea.vmem %s0, 16
  %v162 = vld [vmem:[%s161] sm:$0xff]
  %s163 = scalar_lea.vmem %s1, 80
  %164 = vst [vmem:[%s163] sm:$0xff] %v162
  %s165 = scalar_lea.vmem %s0, 464
  %v166 = vld [vmem:[%s165] sm:$0xff]
  %s167 = scalar_lea.vmem %s1, 528
  %168 = vst [vmem:[%s167] sm:$0xff] %v166
  %s169 = scalar_lea.vmem %s0, 128
  %v170 = vld [vmem:[%s169] sm:$0xff]
  %s171 = scalar_lea.vmem %s1, 192
  %172 = vst [vmem:[%s171] sm:$0xff] %v170
  %s173 = scalar_lea.vmem %s0, 576
  %v174 = vld [vmem:[%s173] sm:$0xff]
  %s175 = scalar_lea.vmem %s1, 640
  %176 = vst [vmem:[%s175] sm:$0xff] %v174
  %s177 = scalar_lea.vmem %s0, 240
  %v178 = vld [vmem:[%s177] sm:$0xff]
  %s179 = scalar_lea.vmem %s1, 304
  %180 = vst [vmem:[%s179] sm:$0xff] %v178
  %s181 = scalar_lea.vmem %s0, 688
  %v182 = vld [vmem:[%s181] sm:$0xff]
  %s183 = scalar_lea.vmem %s1, 752
  %184 = vst [vmem:[%s183] sm:$0xff] %v182
  %s185 = scalar_lea.vmem %s0, 352
  %v186 = vld [vmem:[%s185] sm:$0xff]
  %s187 = scalar_lea.vmem %s1, 416
  %188 = vst [vmem:[%s187] sm:$0xff] %v186
  %s189 = scalar_lea.vmem %s0, 800
  %v190 = vld [vmem:[%s189] sm:$0xff]
  %s191 = scalar_lea.vmem %s1, 864
  %192 = vst [vmem:[%s191] sm:$0xff] %v190
  %v193 = vld [vmem:[%s0] sm:$0xff]
  %s194 = scalar_lea.vmem %s1, 96
  %195 = vst [vmem:[%s194] sm:$0xff] %v193
  %s196 = scalar_lea.vmem %s0, 448
  %v197 = vld [vmem:[%s196] sm:$0xff]
  %s198 = scalar_lea.vmem %s1, 544
  %199 = vst [vmem:[%s198] sm:$0xff] %v197
  %s200 = scalar_lea.vmem %s0, 112
  %v201 = vld [vmem:[%s200] sm:$0xff]
  %s202 = scalar_lea.vmem %s1, 208
  %203 = vst [vmem:[%s202] sm:$0xff] %v201
  %s204 = scalar_lea.vmem %s0, 560
  %v205 = vld [vmem:[%s204] sm:$0xff]
  %s206 = scalar_lea.vmem %s1, 656
  %207 = vst [vmem:[%s206] sm:$0xff] %v205
  %s208 = scalar_lea.vmem %s0, 224
  %v209 = vld [vmem:[%s208] sm:$0xff]
  %s210 = scalar_lea.vmem %s1, 320
  %211 = vst [vmem:[%s210] sm:$0xff] %v209
  %s212 = scalar_lea.vmem %s0, 672
  %v213 = vld [vmem:[%s212] sm:$0xff]
  %s214 = scalar_lea.vmem %s1, 768
  %215 = vst [vmem:[%s214] sm:$0xff] %v213
  %s216 = scalar_lea.vmem %s0, 336
  %v217 = vld [vmem:[%s216] sm:$0xff]
  %s218 = scalar_lea.vmem %s1, 432
  %219 = vst [vmem:[%s218] sm:$0xff] %v217
  %s220 = scalar_lea.vmem %s0, 784
  %v221 = vld [vmem:[%s220] sm:$0xff]
  %s222 = scalar_lea.vmem %s1, 880
  %223 = vst [vmem:[%s222] sm:$0xff] %v221
  %s224 = scalar_lea.vmem %s0, 104
  %v225 = vld [vmem:[%s224] sm:$0xff]
  %s226 = scalar_lea.vmem %s1, 8
  %227 = vst [vmem:[%s226] sm:$0xff] %v225
  %s228 = scalar_lea.vmem %s0, 552
  %v229 = vld [vmem:[%s228] sm:$0xff]
  %s230 = scalar_lea.vmem %s1, 456
  %231 = vst [vmem:[%s230] sm:$0xff] %v229
  %s232 = scalar_lea.vmem %s0, 216
  %v233 = vld [vmem:[%s232] sm:$0xff]
  %s234 = scalar_lea.vmem %s1, 120
  %235 = vst [vmem:[%s234] sm:$0xff] %v233
  %s236 = scalar_lea.vmem %s0, 664
  %v237 = vld [vmem:[%s236] sm:$0xff]
  %s238 = scalar_lea.vmem %s1, 568
  %239 = vst [vmem:[%s238] sm:$0xff] %v237
  %s240 = scalar_lea.vmem %s0, 328
  %v241 = vld [vmem:[%s240] sm:$0xff]
  %s242 = scalar_lea.vmem %s1, 232
  %243 = vst [vmem:[%s242] sm:$0xff] %v241
  %s244 = scalar_lea.vmem %s0, 776
  %v245 = vld [vmem:[%s244] sm:$0xff]
  %s246 = scalar_lea.vmem %s1, 680
  %247 = vst [vmem:[%s246] sm:$0xff] %v245
  %s248 = scalar_lea.vmem %s0, 440
  %v249 = vld [vmem:[%s248] sm:$0xff]
  %s250 = scalar_lea.vmem %s1, 344
  %251 = vst [vmem:[%s250] sm:$0xff] %v249
  %s252 = scalar_lea.vmem %s0, 888
  %v253 = vld [vmem:[%s252] sm:$0xff]
  %s254 = scalar_lea.vmem %s1, 792
  %255 = vst [vmem:[%s254] sm:$0xff] %v253
  %s256 = scalar_lea.vmem %s0, 88
  %v257 = vld [vmem:[%s256] sm:$0xff]
  %s258 = scalar_lea.vmem %s1, 24
  %259 = vst [vmem:[%s258] sm:$0xff] %v257
  %s260 = scalar_lea.vmem %s0, 536
  %v261 = vld [vmem:[%s260] sm:$0xff]
  %s262 = scalar_lea.vmem %s1, 472
  %263 = vst [vmem:[%s262] sm:$0xff] %v261
  %s264 = scalar_lea.vmem %s0, 200
  %v265 = vld [vmem:[%s264] sm:$0xff]
  %s266 = scalar_lea.vmem %s1, 136
  %267 = vst [vmem:[%s266] sm:$0xff] %v265
  %s268 = scalar_lea.vmem %s0, 648
  %v269 = vld [vmem:[%s268] sm:$0xff]
  %s270 = scalar_lea.vmem %s1, 584
  %271 = vst [vmem:[%s270] sm:$0xff] %v269
  %s272 = scalar_lea.vmem %s0, 312
  %v273 = vld [vmem:[%s272] sm:$0xff]
  %s274 = scalar_lea.vmem %s1, 248
  %275 = vst [vmem:[%s274] sm:$0xff] %v273
  %s276 = scalar_lea.vmem %s0, 760
  %v277 = vld [vmem:[%s276] sm:$0xff]
  %s278 = scalar_lea.vmem %s1, 696
  %279 = vst [vmem:[%s278] sm:$0xff] %v277
  %s280 = scalar_lea.vmem %s0, 424
  %v281 = vld [vmem:[%s280] sm:$0xff]
  %s282 = scalar_lea.vmem %s1, 360
  %283 = vst [vmem:[%s282] sm:$0xff] %v281
  %s284 = scalar_lea.vmem %s0, 872
  %v285 = vld [vmem:[%s284] sm:$0xff]
  %s286 = scalar_lea.vmem %s1, 808
  %287 = vst [vmem:[%s286] sm:$0xff] %v285
  %s288 = scalar_lea.vmem %s0, 72
  %v289 = vld [vmem:[%s288] sm:$0xff]
  %s290 = scalar_lea.vmem %s1, 40
  %291 = vst [vmem:[%s290] sm:$0xff] %v289
  %s292 = scalar_lea.vmem %s0, 520
  %v293 = vld [vmem:[%s292] sm:$0xff]
  %s294 = scalar_lea.vmem %s1, 488
  %295 = vst [vmem:[%s294] sm:$0xff] %v293
  %s296 = scalar_lea.vmem %s0, 184
  %v297 = vld [vmem:[%s296] sm:$0xff]
  %s298 = scalar_lea.vmem %s1, 152
  %299 = vst [vmem:[%s298] sm:$0xff] %v297
  %s300 = scalar_lea.vmem %s0, 632
  %v301 = vld [vmem:[%s300] sm:$0xff]
  %s302 = scalar_lea.vmem %s1, 600
  %303 = vst [vmem:[%s302] sm:$0xff] %v301
  %s304 = scalar_lea.vmem %s0, 296
  %v305 = vld [vmem:[%s304] sm:$0xff]
  %s306 = scalar_lea.vmem %s1, 264
  %307 = vst [vmem:[%s306] sm:$0xff] %v305
  %s308 = scalar_lea.vmem %s0, 744
  %v309 = vld [vmem:[%s308] sm:$0xff]
  %s310 = scalar_lea.vmem %s1, 712
  %311 = vst [vmem:[%s310] sm:$0xff] %v309
  %s312 = scalar_lea.vmem %s0, 408
  %v313 = vld [vmem:[%s312] sm:$0xff]
  %s314 = scalar_lea.vmem %s1, 376
  %315 = vst [vmem:[%s314] sm:$0xff] %v313
  %s316 = scalar_lea.vmem %s0, 856
  %v317 = vld [vmem:[%s316] sm:$0xff]
  %s318 = scalar_lea.vmem %s1, 824
  %319 = vst [vmem:[%s318] sm:$0xff] %v317
  %s320 = scalar_lea.vmem %s0, 56
  %v321 = vld [vmem:[%s320] sm:$0xff]
  %s322 = scalar_lea.vmem %s1, 56
  %323 = vst [vmem:[%s322] sm:$0xff] %v321
  %s324 = scalar_lea.vmem %s0, 504
  %v325 = vld [vmem:[%s324] sm:$0xff]
  %s326 = scalar_lea.vmem %s1, 504
  %327 = vst [vmem:[%s326] sm:$0xff] %v325
  %s328 = scalar_lea.vmem %s0, 168
  %v329 = vld [vmem:[%s328] sm:$0xff]
  %s330 = scalar_lea.vmem %s1, 168
  %331 = vst [vmem:[%s330] sm:$0xff] %v329
  %s332 = scalar_lea.vmem %s0, 616
  %v333 = vld [vmem:[%s332] sm:$0xff]
  %s334 = scalar_lea.vmem %s1, 616
  %335 = vst [vmem:[%s334] sm:$0xff] %v333
  %s336 = scalar_lea.vmem %s0, 280
  %v337 = vld [vmem:[%s336] sm:$0xff]
  %s338 = scalar_lea.vmem %s1, 280
  %339 = vst [vmem:[%s338] sm:$0xff] %v337
  %s340 = scalar_lea.vmem %s0, 728
  %v341 = vld [vmem:[%s340] sm:$0xff]
  %s342 = scalar_lea.vmem %s1, 728
  %343 = vst [vmem:[%s342] sm:$0xff] %v341
  %s344 = scalar_lea.vmem %s0, 392
  %v345 = vld [vmem:[%s344] sm:$0xff]
  %s346 = scalar_lea.vmem %s1, 392
  %347 = vst [vmem:[%s346] sm:$0xff] %v345
  %s348 = scalar_lea.vmem %s0, 840
  %v349 = vld [vmem:[%s348] sm:$0xff]
  %s350 = scalar_lea.vmem %s1, 840
  %351 = vst [vmem:[%s350] sm:$0xff] %v349
  %s352 = scalar_lea.vmem %s0, 40
  %v353 = vld [vmem:[%s352] sm:$0xff]
  %s354 = scalar_lea.vmem %s1, 72
  %355 = vst [vmem:[%s354] sm:$0xff] %v353
  %s356 = scalar_lea.vmem %s0, 488
  %v357 = vld [vmem:[%s356] sm:$0xff]
  %s358 = scalar_lea.vmem %s1, 520
  %359 = vst [vmem:[%s358] sm:$0xff] %v357
  %s360 = scalar_lea.vmem %s0, 152
  %v361 = vld [vmem:[%s360] sm:$0xff]
  %s362 = scalar_lea.vmem %s1, 184
  %363 = vst [vmem:[%s362] sm:$0xff] %v361
  %s364 = scalar_lea.vmem %s0, 600
  %v365 = vld [vmem:[%s364] sm:$0xff]
  %s366 = scalar_lea.vmem %s1, 632
  %367 = vst [vmem:[%s366] sm:$0xff] %v365
  %s368 = scalar_lea.vmem %s0, 264
  %v369 = vld [vmem:[%s368] sm:$0xff]
  %s370 = scalar_lea.vmem %s1, 296
  %371 = vst [vmem:[%s370] sm:$0xff] %v369
  %s372 = scalar_lea.vmem %s0, 712
  %v373 = vld [vmem:[%s372] sm:$0xff]
  %s374 = scalar_lea.vmem %s1, 744
  %375 = vst [vmem:[%s374] sm:$0xff] %v373
  %s376 = scalar_lea.vmem %s0, 376
  %v377 = vld [vmem:[%s376] sm:$0xff]
  %s378 = scalar_lea.vmem %s1, 408
  %379 = vst [vmem:[%s378] sm:$0xff] %v377
  %s380 = scalar_lea.vmem %s0, 824
  %v381 = vld [vmem:[%s380] sm:$0xff]
  %s382 = scalar_lea.vmem %s1, 856
  %383 = vst [vmem:[%s382] sm:$0xff] %v381
  %s384 = scalar_lea.vmem %s0, 24
  %v385 = vld [vmem:[%s384] sm:$0xff]
  %s386 = scalar_lea.vmem %s1, 88
  %387 = vst [vmem:[%s386] sm:$0xff] %v385
  %s388 = scalar_lea.vmem %s0, 472
  %v389 = vld [vmem:[%s388] sm:$0xff]
  %s390 = scalar_lea.vmem %s1, 536
  %391 = vst [vmem:[%s390] sm:$0xff] %v389
  %s392 = scalar_lea.vmem %s0, 136
  %v393 = vld [vmem:[%s392] sm:$0xff]
  %s394 = scalar_lea.vmem %s1, 200
  %395 = vst [vmem:[%s394] sm:$0xff] %v393
  %s396 = scalar_lea.vmem %s0, 584
  %v397 = vld [vmem:[%s396] sm:$0xff]
  %s398 = scalar_lea.vmem %s1, 648
  %399 = vst [vmem:[%s398] sm:$0xff] %v397
  %s400 = scalar_lea.vmem %s0, 248
  %v401 = vld [vmem:[%s400] sm:$0xff]
  %s402 = scalar_lea.vmem %s1, 312
  %403 = vst [vmem:[%s402] sm:$0xff] %v401
  %s404 = scalar_lea.vmem %s0, 696
  %v405 = vld [vmem:[%s404] sm:$0xff]
  %s406 = scalar_lea.vmem %s1, 760
  %407 = vst [vmem:[%s406] sm:$0xff] %v405
  %s408 = scalar_lea.vmem %s0, 360
  %v409 = vld [vmem:[%s408] sm:$0xff]
  %s410 = scalar_lea.vmem %s1, 424
  %411 = vst [vmem:[%s410] sm:$0xff] %v409
  %s412 = scalar_lea.vmem %s0, 808
  %v413 = vld [vmem:[%s412] sm:$0xff]
  %s414 = scalar_lea.vmem %s1, 872
  %415 = vst [vmem:[%s414] sm:$0xff] %v413
  %s416 = scalar_lea.vmem %s0, 8
  %v417 = vld [vmem:[%s416] sm:$0xff]
  %s418 = scalar_lea.vmem %s1, 104
  %419 = vst [vmem:[%s418] sm:$0xff] %v417
  %s420 = scalar_lea.vmem %s0, 456
  %v421 = vld [vmem:[%s420] sm:$0xff]
  %s422 = scalar_lea.vmem %s1, 552
  %423 = vst [vmem:[%s422] sm:$0xff] %v421
  %s424 = scalar_lea.vmem %s0, 120
  %v425 = vld [vmem:[%s424] sm:$0xff]
  %s426 = scalar_lea.vmem %s1, 216
  %427 = vst [vmem:[%s426] sm:$0xff] %v425
  %s428 = scalar_lea.vmem %s0, 568
  %v429 = vld [vmem:[%s428] sm:$0xff]
  %s430 = scalar_lea.vmem %s1, 664
  %431 = vst [vmem:[%s430] sm:$0xff] %v429
  %s432 = scalar_lea.vmem %s0, 232
  %v433 = vld [vmem:[%s432] sm:$0xff]
  %s434 = scalar_lea.vmem %s1, 328
  %435 = vst [vmem:[%s434] sm:$0xff] %v433
  %s436 = scalar_lea.vmem %s0, 680
  %v437 = vld [vmem:[%s436] sm:$0xff]
  %s438 = scalar_lea.vmem %s1, 776
  %439 = vst [vmem:[%s438] sm:$0xff] %v437
  %s440 = scalar_lea.vmem %s0, 344
  %v441 = vld [vmem:[%s440] sm:$0xff]
  %s442 = scalar_lea.vmem %s1, 440
  %443 = vst [vmem:[%s442] sm:$0xff] %v441
  %s444 = scalar_lea.vmem %s0, 792
  %v445 = vld [vmem:[%s444] sm:$0xff]
  %s446 = scalar_lea.vmem %s1, 888
  %447 = vst [vmem:[%s446] sm:$0xff] %v445

</llo_original>
